<compile_context>
chip_gen: v7x
topology: tpu7x:2x2x1
jax: 0.10.0
libtpu: 0.0.40
codegen_flags: <defaults>
</compile_context>

<pallas_src>
import functools

import jax
import jax.numpy as jnp
from jax.experimental import pallas as pl
from jax.experimental.pallas import tpu as pltpu


def _round_up(x, m):
    return -(-x // m) * m


def _attention_kernel(enc_ref, dec_ref,
                      we_ref, be_ref,      # We^T: (E, A_pad), be: (1, A_pad)
                      wd_ref, bd_ref,      # Wd^T: (D, A_pad), bd: (1, A_pad)
                      wf_ref,              # wf:   (1, A_pad)  (zero-padded cols)
                      bf_ref,              # bf:   (1,) scalar in SMEM
                      ctx_ref, alpha_ref,
                      *, t_valid):
    tb, t_pad, e = enc_ref.shape
    a_pad = we_ref.shape[1]

    enc = enc_ref[...]                                     # (TB, T_pad, E) bf16 stream
    dec = dec_ref[...]                                     # (TB, D)       bf16 stream

    # ---- att1 = encoder_att(enc): one dense (TB*T_pad, E) @ (E, A_pad) MXU matmul.
    # T_pad % 8 == 0 so this reshape does not cross (8,128) sublane tiles.
    att1 = jnp.dot(enc.reshape(tb * t_pad, e), we_ref[...],
                   preferred_element_type=jnp.float32)     # (TB*T_pad, A_pad) f32
    att1 = att1 + be_ref[...]

    # ---- att2 = decoder_att(dec): (TB, D) @ (D, A_pad) ----
    att2 = jnp.dot(dec, wd_ref[...],
                   preferred_element_type=jnp.float32) + bd_ref[...]    # (TB, A_pad)

    # ---- relu(att1 + att2.unsqueeze(1))  (VPU, f32) ----
    h = jnp.maximum(att1.reshape(tb, t_pad, a_pad) + att2[:, None, :], 0.0)

    # ---- full_att(h).squeeze(2): N=1 projection as a VPU lane reduction over A_pad.
    # Zero-padded A columns contribute relu(0) * 0 = 0, so the pad is exact.
    scores = jnp.sum(h * wf_ref[...], axis=-1) + bf_ref[0]              # (TB, T_pad)

    # ---- mask padded tokens before the softmax (static Python condition) ----
    if t_valid != t_pad:
        tok = jax.lax.broadcasted_iota(jnp.int32, (tb, t_pad), 1)
        scores = jnp.where(tok < t_valid, scores, -jnp.inf)

    # ---- softmax over the token axis (whole T_pad present in the block) ----
    # TODO(synk): pl.reciprocal(approx=True) normalizes alpha only to ~1e-3;
    # switch to an exact divide if strict training parity is required.
    m = jnp.max(scores, axis=-1, keepdims=True)
    ex = jnp.exp(scores - m)
    denom = jnp.sum(ex, axis=-1, keepdims=True)
    alpha = ex * pl.reciprocal(denom, approx=True)                      # (TB, T_pad)

    # ---- context = sum_t alpha_t * enc_t : VPU multiply + sublane reduction.
    # TODO(synk): if profiling shows the VPU/XLU slot binding at large E, move
    # this to a batched lax.dot_general on the MXU (it has slack after att1).
    ctx = jnp.sum(enc.astype(jnp.float32) * alpha[:, :, None], axis=1)  # (TB, E)

    ctx_ref[...] = ctx.astype(ctx_ref.dtype)
    alpha_ref[...] = alpha.astype(alpha_ref.dtype)


def attention_forward(encoder_features, decoder_hidden, params, *,
                      block_b=None,
                      stream_dtype=jnp.bfloat16,
                      mxu_dtype=jnp.bfloat16):
    """Bahdanau attention forward.

    Args:
      encoder_features: (B, T, E) float array.
      decoder_hidden:   (B, D) float array.
      params: dict with we (A,E), be (A,), wd (A,D), bd (A,), wf (1,A), bf (1,).
      block_b: optional manual batch tile override (auto-derived if None).
      stream_dtype: dtype used to stream enc/dec from HBM (bf16 halves traffic).
      mxu_dtype: dtype of the resident weight operands on the MXU.
    Returns:
      context (B, E) f32, alpha (B, T) f32.
    """
    B, T, E = encoder_features.shape
    D = decoder_hidden.shape[1]
    A = params["we"].shape[0]

    stream_isz = jnp.dtype(stream_dtype).itemsize
    mxu_isz = jnp.dtype(mxu_dtype).itemsize

    # ---- pad the attention dim to a lane-dense multiple of 128 (zero columns) ----
    A_pad = _round_up(A, 128)
    we_t = jnp.asarray(params["we"]).T.astype(mxu_dtype)            # (E, A)
    wd_t = jnp.asarray(params["wd"]).T.astype(mxu_dtype)            # (D, A)
    be = jnp.asarray(params["be"]).reshape(1, A).astype(jnp.float32)
    bd = jnp.asarray(params["bd"]).reshape(1, A).astype(jnp.float32)
    wf = jnp.asarray(params["wf"]).reshape(1, A).astype(jnp.float32)
    bf = jnp.asarray(params["bf"]).reshape(1).astype(jnp.float32)   # SMEM scalar
    if A_pad != A:
        pad_a = ((0, 0), (0, A_pad - A))
        we_t = jnp.pad(we_t, pad_a)
        wd_t = jnp.pad(wd_t, pad_a)
        be = jnp.pad(be, pad_a)
        bd = jnp.pad(bd, pad_a)
        wf = jnp.pad(wf, pad_a)

    # ---- pad T to a sublane multiple (padded scores masked to -inf in-kernel) ----
    T_pad = _round_up(T, 8)
    enc = encoder_features.astype(stream_dtype)      # bf16 stream: halves HBM bytes
    dec = decoder_hidden.astype(stream_dtype)
    if T_pad != T:
        enc = jnp.pad(enc, ((0, 0), (0, T_pad - T), (0, 0)))

    # ---- batch tile selection: big tiles, VMEM-budgeted, >= 2 grid steps ----
    per_row = (2 * T_pad * E * stream_isz            # enc block (double buffered)
               + 2 * D * stream_isz                  # dec block (double buffered)
               + 3 * T_pad * A_pad * 4               # att1 / h / exp f32 temporaries
               + 2 * T_pad * E * 4                   # f32 enc copy in the context step
               + 2 * (E + T_pad) * 4)                # ctx / alpha output buffers
    fixed = 2 * ((E + D) * A_pad * mxu_isz + 3 * A_pad * 4)   # resident weights/biases
    vmem_budget = 36 << 20                           # conservative: fits v7x's 64 MiB

    if block_b is not None:
        tb_req = int(block_b)
    else:
        tb_mxu = -(-256 // T_pad)                            # M = TB*T >= 256
        tb_bytes = (4 << 20) // max(T_pad * E * stream_isz, 1)   # ~4 MiB enc tile
        tb_vmem = max(1, (vmem_budget - fixed) // max(per_row, 1))
        tb_req = min(max(tb_mxu, tb_bytes), tb_vmem)

    if B <= 8:
        TB = B   # tiny batch: single grid step covers everything
        # TODO(synk): a single-step grid leaves one v7x TensorCore idle.
    else:
        B8 = _round_up(B, 8)
        max_tb = max(8, ((B8 // 2) // 8) * 8)        # keep >= 2 steps for v7x's 2 TCs
        TB = max(8, min((int(tb_req) // 8) * 8, max_tb))
    B_pad = _round_up(B, TB)

    if B_pad != B:
        enc = jnp.pad(enc, ((0, B_pad - B), (0, 0), (0, 0)))
        dec = jnp.pad(dec, ((0, B_pad - B), (0, 0)))

    # ---- explicit VMEM limit: above v5e/v6e scoped defaults, under v7x physical ----
    needed = TB * per_row + fixed
    vmem_limit = int(min(max(needed + needed // 4, 32 << 20), 48 << 20))

    grid = (B_pad // TB,)
    out_shape = (
        jax.ShapeDtypeStruct((B_pad, E), jnp.float32),       # context
        jax.ShapeDtypeStruct((B_pad, T_pad), jnp.float32),   # alpha
    )
    in_specs = [
        pl.BlockSpec((TB, T_pad, E), lambda b: (b, 0, 0)),   # enc (streamed)
        pl.BlockSpec((TB, D), lambda b: (b, 0)),             # dec (streamed)
        # TODO(synk): on v7x set pipeline_mode=pl.Buffered(1) on these constant-index
        # weight blocks to avoid double-buffering them in the 64 MiB VMEM.
        pl.BlockSpec((E, A_pad), lambda b: (0, 0)),          # We^T (resident)
        pl.BlockSpec((1, A_pad), lambda b: (0, 0)),          # be
        pl.BlockSpec((D, A_pad), lambda b: (0, 0)),          # Wd^T (resident)
        pl.BlockSpec((1, A_pad), lambda b: (0, 0)),          # bd
        pl.BlockSpec((1, A_pad), lambda b: (0, 0)),          # wf
        pl.BlockSpec(memory_space=pltpu.MemorySpace.SMEM),   # bf scalar
    ]
    out_specs = (
        pl.BlockSpec((TB, E), lambda b: (b, 0)),
        pl.BlockSpec((TB, T_pad), lambda b: (b, 0)),
    )

    kernel = functools.partial(_attention_kernel, t_valid=T)

    ctx, alpha = pl.pallas_call(
        kernel,
        grid=grid,
        in_specs=in_specs,
        out_specs=out_specs,
        out_shape=out_shape,
        compiler_params=pltpu.CompilerParams(
            dimension_semantics=("parallel",),   # v7x shards the batch grid over 2 TCs
            vmem_limit_bytes=vmem_limit),
    )(enc, dec, we_t, be, wd_t, bd, wf, bf)

    return ctx[:B], alpha[:B, :T]


def attention_reference(encoder_features, decoder_hidden, params):
    """Pure-JAX f32 reference mirroring the PyTorch forward."""
    att1 = encoder_features @ params["we"].T + params["be"]            # (B,T,A)
    att2 = decoder_hidden @ params["wd"].T + params["bd"]              # (B,A)
    att = jnp.maximum(att1 + att2[:, None, :], 0.0)                    # (B,T,A)
    scores = (att @ params["wf"].T + params["bf"])[..., 0]             # (B,T)
    alpha = jax.nn.softmax(scores, axis=1)                             # (B,T)
    context = (encoder_features * alpha[:, :, None]).sum(axis=1)       # (B,E)
    return context, alpha


def _run_case(key, B, T, E, D, A):
    k_enc, k_dec, k1, k2, k3, k4, k5, k6 = jax.random.split(key, 8)
    encoder_features = jax.random.normal(k_enc, (B, T, E), dtype=jnp.float32)
    decoder_hidden = jax.random.normal(k_dec, (B, D), dtype=jnp.float32)
    params = {
        "we": 0.1 * jax.random.normal(k1, (A, E), dtype=jnp.float32),
        "be": 0.1 * jax.random.normal(k2, (A,), dtype=jnp.float32),
        "wd": 0.1 * jax.random.normal(k3, (A, D), dtype=jnp.float32),
        "bd": 0.1 * jax.random.normal(k4, (A,), dtype=jnp.float32),
        "wf": 0.1 * jax.random.normal(k5, (1, A), dtype=jnp.float32),
        "bf": 0.1 * jax.random.normal(k6, (1,), dtype=jnp.float32),
    }

    ctx, alpha = attention_forward(encoder_features, decoder_hidden, params)
    ctx = jax.block_until_ready(ctx)
    alpha = jax.block_until_ready(alpha)

    ctx_ref, alpha_ref = attention_reference(encoder_features, decoder_hidden, params)

    assert ctx.shape == (B, E) and alpha.shape == (B, T)
    # bf16 streaming / bf16 MXU operands + approx reciprocal -> ~1e-2 tolerance.
    assert jnp.allclose(ctx, ctx_ref, atol=2e-2, rtol=2e-2), "context mismatch"
    assert jnp.allclose(alpha, alpha_ref, atol=2e-2, rtol=2e-2), "alpha mismatch"
    assert jnp.allclose(alpha.sum(axis=1), 1.0, atol=5e-3), "alpha rows must sum to 1"


if __name__ == "__main__":
    # Small case: single grid step, block == full batch.
    _run_case(jax.random.PRNGKey(0), B=2, T=8, E=32, D=32, A=32)
    # Multi-step case: batch blocking (TB=8) + batch padding (20 -> 24).
    _run_case(jax.random.PRNGKey(1), B=20, T=8, E=32, D=32, A=32)
    # T not a multiple of 8: exercises T padding (10 -> 16) + -inf score masking.
    _run_case(jax.random.PRNGKey(2), B=12, T=10, E=32, D=32, A=32)
    print("KERNEL_OK")
</pallas_src>

<mosaic_0001>
module attributes {stable_mosaic.version = 11 : i64} {
  func.func @_attention_kernel(%arg0: i32, %arg1: memref<2x8x32xbf16, #tpu.memory_space<vmem>>, %arg2: memref<2x32xbf16, #tpu.memory_space<vmem>>, %arg3: memref<32x128xbf16, #tpu.memory_space<vmem>>, %arg4: memref<1x128xf32, #tpu.memory_space<vmem>>, %arg5: memref<32x128xbf16, #tpu.memory_space<vmem>>, %arg6: memref<1x128xf32, #tpu.memory_space<vmem>>, %arg7: memref<1x128xf32, #tpu.memory_space<vmem>>, %arg8: memref<1xf32, #tpu.memory_space<smem>>, %arg9: memref<2x32xf32, #tpu.memory_space<vmem>>, %arg10: memref<2x8xf32, #tpu.memory_space<vmem>>) attributes {dimension_semantics = [#tpu.dimension_semantics<parallel>], iteration_bounds = array<i64: 1>, scalar_prefetch = 0 : i64, scratch_operands = 0 : i64, tpu.core_type = #tpu.core_type<tc>, window_params = [{transform_indices = @transform_0, window_bounds = array<i64: 2, 8, 32>}, {transform_indices = @transform_1, window_bounds = array<i64: 2, 32>}, {pipeline_mode = #tpu.pipeline_mode<synchronous>, transform_indices = @transform_2, window_bounds = array<i64: 32, 128>}, {pipeline_mode = #tpu.pipeline_mode<synchronous>, transform_indices = @transform_3, window_bounds = array<i64: 1, 128>}, {pipeline_mode = #tpu.pipeline_mode<synchronous>, transform_indices = @transform_4, window_bounds = array<i64: 32, 128>}, {pipeline_mode = #tpu.pipeline_mode<synchronous>, transform_indices = @transform_5, window_bounds = array<i64: 1, 128>}, {pipeline_mode = #tpu.pipeline_mode<synchronous>, transform_indices = @transform_6, window_bounds = array<i64: 1, 128>}, {transform_indices = @transform_7, window_bounds = array<i64: 1>}, {transform_indices = @transform_8, window_bounds = array<i64: 2, 32>}, {transform_indices = @transform_9, window_bounds = array<i64: 2, 8>}]} {
    %c0 = arith.constant 0 : index
    %c0_0 = arith.constant 0 : index
    %c0_1 = arith.constant 0 : index
    %0 = vector.load %arg1[%c0, %c0_0, %c0_1] : memref<2x8x32xbf16, #tpu.memory_space<vmem>>, vector<2x8x32xbf16>
    %c0_2 = arith.constant 0 : index
    %c0_3 = arith.constant 0 : index
    %1 = vector.load %arg2[%c0_2, %c0_3] : memref<2x32xbf16, #tpu.memory_space<vmem>>, vector<2x32xbf16>
    %2 = vector.shape_cast %0 : vector<2x8x32xbf16> to vector<16x32xbf16>
    %c0_4 = arith.constant 0 : index
    %c0_5 = arith.constant 0 : index
    %3 = vector.load %arg3[%c0_4, %c0_5] : memref<32x128xbf16, #tpu.memory_space<vmem>>, vector<32x128xbf16>
    %cst = arith.constant dense<0.000000e+00> : vector<16x128xf32>
    %4 = tpu.matmul %2, %3, %cst {dimension_numbers = #tpu.dot_dimension_numbers<[1], [0], [0], [1], [0, 0, 1, 1], [], []>} : vector<16x32xbf16>, vector<32x128xbf16>, vector<16x128xf32> -> vector<16x128xf32>
    %c0_6 = arith.constant 0 : index
    %c0_7 = arith.constant 0 : index
    %5 = vector.load %arg4[%c0_6, %c0_7] : memref<1x128xf32, #tpu.memory_space<vmem>>, vector<1x128xf32>
    %6 = vector.broadcast %5 : vector<1x128xf32> to vector<16x128xf32>
    %7 = arith.addf %4, %6 : vector<16x128xf32>
    %c0_8 = arith.constant 0 : index
    %c0_9 = arith.constant 0 : index
    %8 = vector.load %arg5[%c0_8, %c0_9] : memref<32x128xbf16, #tpu.memory_space<vmem>>, vector<32x128xbf16>
    %cst_10 = arith.constant dense<0.000000e+00> : vector<2x128xf32>
    %9 = tpu.matmul %1, %8, %cst_10 {dimension_numbers = #tpu.dot_dimension_numbers<[1], [0], [0], [1], [0, 0, 1, 1], [], []>} : vector<2x32xbf16>, vector<32x128xbf16>, vector<2x128xf32> -> vector<2x128xf32>
    %c0_11 = arith.constant 0 : index
    %c0_12 = arith.constant 0 : index
    %10 = vector.load %arg6[%c0_11, %c0_12] : memref<1x128xf32, #tpu.memory_space<vmem>>, vector<1x128xf32>
    %11 = vector.broadcast %10 : vector<1x128xf32> to vector<2x128xf32>
    %12 = arith.addf %9, %11 : vector<2x128xf32>
    %13 = vector.shape_cast %7 : vector<16x128xf32> to vector<2x8x128xf32>
    %14 = vector.shape_cast %12 : vector<2x128xf32> to vector<2x1x128xf32>
    %15 = vector.broadcast %14 : vector<2x1x128xf32> to vector<2x8x128xf32>
    %16 = arith.addf %13, %15 : vector<2x8x128xf32>
    %cst_13 = arith.constant 0.000000e+00 : f32
    %17 = vector.broadcast %cst_13 : f32 to vector<2x8x128xf32>
    %18 = arith.maximumf %16, %17 : vector<2x8x128xf32>
    %c0_14 = arith.constant 0 : index
    %c0_15 = arith.constant 0 : index
    %19 = vector.load %arg7[%c0_14, %c0_15] : memref<1x128xf32, #tpu.memory_space<vmem>>, vector<1x128xf32>
    %20 = vector.shape_cast %19 : vector<1x128xf32> to vector<1x1x128xf32>
    %21 = vector.broadcast %20 : vector<1x1x128xf32> to vector<2x8x128xf32>
    %22 = arith.mulf %18, %21 : vector<2x8x128xf32>
    %cst_16 = arith.constant dense<0.000000e+00> : vector<2x8xf32>
    %23 = vector.multi_reduction <add>, %22, %cst_16 [2] : vector<2x8x128xf32> to vector<2x8xf32>
    %c0_17 = arith.constant 0 : index
    %24 = memref.load %arg8[%c0_17] : memref<1xf32, #tpu.memory_space<smem>>
    %25 = vector.broadcast %24 : f32 to vector<2x8xf32>
    %26 = arith.addf %23, %25 : vector<2x8xf32>
    %cst_18 = arith.constant dense<0xFF800000> : vector<2xf32>
    %27 = vector.multi_reduction <maximumf>, %26, %cst_18 [1] : vector<2x8xf32> to vector<2xf32>
    %28 = vector.shape_cast %27 : vector<2xf32> to vector<2x1xf32>
    %29 = vector.broadcast %28 : vector<2x1xf32> to vector<2x8xf32>
    %30 = arith.subf %26, %29 : vector<2x8xf32>
    %31 = math.exp %30 : vector<2x8xf32>
    %cst_19 = arith.constant dense<0.000000e+00> : vector<2xf32>
    %32 = vector.multi_reduction <add>, %31, %cst_19 [1] : vector<2x8xf32> to vector<2xf32>
    %33 = vector.shape_cast %32 : vector<2xf32> to vector<2x1xf32>
    %34 = tpu.reciprocal %33 {approx = true} : vector<2x1xf32> -> vector<2x1xf32>
    %35 = vector.broadcast %34 : vector<2x1xf32> to vector<2x8xf32>
    %36 = arith.mulf %31, %35 : vector<2x8xf32>
    %37 = arith.extf %0 : vector<2x8x32xbf16> to vector<2x8x32xf32>
    %38 = vector.shape_cast %36 : vector<2x8xf32> to vector<2x8x1xf32>
    %39 = vector.broadcast %38 : vector<2x8x1xf32> to vector<2x8x32xf32>
    %40 = arith.mulf %37, %39 : vector<2x8x32xf32>
    %cst_20 = arith.constant dense<0.000000e+00> : vector<2x32xf32>
    %41 = vector.multi_reduction <add>, %40, %cst_20 [1] : vector<2x8x32xf32> to vector<2x32xf32>
    %c0_21 = arith.constant 0 : index
    %c0_22 = arith.constant 0 : index
    %42 = vector.load %arg9[%c0_21, %c0_22] : memref<2x32xf32, #tpu.memory_space<vmem>>, vector<2x32xf32>
    tpu.vector_store %arg9[%c0_21, %c0_22], %41 {strides = array<i32>} : memref<2x32xf32, #tpu.memory_space<vmem>>, vector<2x32xf32>,
    %c0_23 = arith.constant 0 : index
    %c0_24 = arith.constant 0 : index
    %43 = vector.load %arg10[%c0_23, %c0_24] : memref<2x8xf32, #tpu.memory_space<vmem>>, vector<2x8xf32>
    tpu.vector_store %arg10[%c0_23, %c0_24], %36 {strides = array<i32>} : memref<2x8xf32, #tpu.memory_space<vmem>>, vector<2x8xf32>,
    return
  }
  func.func @transform_0(%arg0: i32) -> (i32, i32, i32) {
    %c0_i32 = arith.constant 0 : i32
    %c0_i32_0 = arith.constant 0 : i32
    %c0_i32_1 = arith.constant 0 : i32
    return %arg0, %c0_i32, %c0_i32_0 : i32, i32, i32
  }
  func.func @transform_1(%arg0: i32) -> (i32, i32) {
    %c0_i32 = arith.constant 0 : i32
    %c0_i32_0 = arith.constant 0 : i32
    return %arg0, %c0_i32 : i32, i32
  }
  func.func @transform_2(%arg0: i32) -> (i32, i32) {
    %c0_i32 = arith.constant 0 : i32
    %c0_i32_0 = arith.constant 0 : i32
    %c0_i32_1 = arith.constant 0 : i32
    return %c0_i32, %c0_i32_0 : i32, i32
  }
  func.func @transform_3(%arg0: i32) -> (i32, i32) {
    %c0_i32 = arith.constant 0 : i32
    %c0_i32_0 = arith.constant 0 : i32
    %c0_i32_1 = arith.constant 0 : i32
    return %c0_i32, %c0_i32_0 : i32, i32
  }
  func.func @transform_4(%arg0: i32) -> (i32, i32) {
    %c0_i32 = arith.constant 0 : i32
    %c0_i32_0 = arith.constant 0 : i32
    %c0_i32_1 = arith.constant 0 : i32
    return %c0_i32, %c0_i32_0 : i32, i32
  }
  func.func @transform_5(%arg0: i32) -> (i32, i32) {
    %c0_i32 = arith.constant 0 : i32
    %c0_i32_0 = arith.constant 0 : i32
    %c0_i32_1 = arith.constant 0 : i32
    return %c0_i32, %c0_i32_0 : i32, i32
  }
  func.func @transform_6(%arg0: i32) -> (i32, i32) {
    %c0_i32 = arith.constant 0 : i32
    %c0_i32_0 = arith.constant 0 : i32
    %c0_i32_1 = arith.constant 0 : i32
    return %c0_i32, %c0_i32_0 : i32, i32
  }
  func.func @transform_7(%arg0: i32) -> i32 {
    %c0_i32 = arith.constant 0 : i32
    %c0_i32_0 = arith.constant 0 : i32
    return %c0_i32 : i32
  }
  func.func @transform_8(%arg0: i32) -> (i32, i32) {
    %c0_i32 = arith.constant 0 : i32
    %c0_i32_0 = arith.constant 0 : i32
    return %arg0, %c0_i32 : i32, i32
  }
  func.func @transform_9(%arg0: i32) -> (i32, i32) {
    %c0_i32 = arith.constant 0 : i32
    %c0_i32_0 = arith.constant 0 : i32
    return %arg0, %c0_i32 : i32, i32
  }
}

</mosaic_0001>

<llo_original>
// kernel: tpu_custom_call.1
$region0: #{tpu_custom_call.1}
  #allocation0 [shape = 'u32[]', space=smem, size = 0x4, offset = 0x4, fixed_abs, tag = 'smem constant byte address 0x4 - core index']
  #allocation1 [shape = 'u32[144,128]{1,0:T(1,128)}', space=vmem, size = 0x12000, scoped, tag = 'internal scratch']
  #allocation2 [shape = 'f32[1]{0:T(128)S(6)}', space=smem, size = 0x200, scoped, tag = 'scoped memory for tpu_custom_call.1']
  %s0 = inlined_call_operand.hbm [shape: bf16[2,8,32], index: 0, kind: input, shape index: {}]
  %s1 = inlined_call_operand.vmem [shape: bf16[2,32], index: 1, kind: input, shape index: {}]
  %s2 = inlined_call_operand.hbm [shape: bf16[32,128], index: 2, kind: input, shape index: {}]
  %s3 = inlined_call_operand.vmem [shape: f32[1,128], index: 3, kind: input, shape index: {}]
  %s4 = inlined_call_operand.vmem [shape: bf16[32,128], index: 4, kind: input, shape index: {}]
  %s5 = inlined_call_operand.vmem [shape: f32[1,128], index: 5, kind: input, shape index: {}]
  %s6 = inlined_call_operand.vmem [shape: f32[1,128], index: 6, kind: input, shape index: {}]
  %s7 = inlined_call_operand.<no memory space> [shape: f32[1], index: 7, kind: input, shape index: {}]
  %s8 = inlined_call_operand.hbm [shape: f32[2,32], index: 8, kind: output, shape index: {0}]
  %s9 = inlined_call_operand.hbm [shape: f32[2,8], index: 9, kind: output, shape index: {1}]
  %10 = xla_tuple %s8, %s9
  %s11 = sld [smem:[#allocation0]]
  $region58: #{tpu_custom_call.1} parent=0
    _
  %s13 = ssub.s32 1, %s11
  %s14 = scalar_select 0, %s13, %s11
  %15 = sst [smem:[#allocation2]] %s7
  $region1: #{tpu_custom_call.1} parent=0
    #allocation3 [shape = 'u8[4096]{0}', space=vmem, size = 0x1000, scoped, tag = 'input window, operand 0, single buffered']
    #allocation4 [shape = 's32[1]{0}', space=sflag, size = 0x4, scoped, tag = 'scoped memory for tpu_custom_call.1']
    #allocation5 [shape = 's32[1]{0}', space=sflag, size = 0x4, scoped, tag = 'scoped memory for tpu_custom_call.1']
    #allocation6 [shape = 'u8[8192]{0}', space=vmem, size = 0x2000, scoped, tag = 'input window, operand 2, single buffered']
    #allocation7 [shape = 's32[1]{0}', space=sflag, size = 0x4, scoped, tag = 'scoped memory for tpu_custom_call.1']
    #allocation8 [shape = 'u8[1024]{0}', space=vmem, size = 0x400, scoped, tag = 'output window, operand 0, single buffered']
    #allocation9 [shape = 'u8[1024]{0}', space=vmem, size = 0x400, scoped, tag = 'output window, operand 1, single buffered']
    #allocation10 [shape = 's32[1]{0}', space=sflag, size = 0x4, scoped, tag = 'scoped memory for tpu_custom_call.1']
    %16 = vsyncpa [#allocation4], 0
    %17 = vsyncpa [#allocation7], 0
    %18 = vsyncpa [#allocation5], 0
    %19 = vsyncpa [#allocation10], 0
    // Predicated region
    $region2: #{tpu_custom_call.1} parent=1 // pred_check
      _
    $region3: #{tpu_custom_call.1} parent=1 // pred_check_branch
      %21 = sbr.rel (0) target = $region5
    $region4: #{tpu_custom_call.1} parent=1 // pred_region
      %s23 = ssub.s32 128, 128
      %24 = vsyncadd [#allocation4], %s23
      %s25 = sshll.u32 [#allocation3], 4
      %s26 = int_to_ptr.vmem [resolvable:$true] %s25
      %31 = dma.hbm_to_vmem [thread:$0]  %s0, 128, %s26, [#allocation4], 64, 64, 4
    $region5: #{tpu_custom_call.1} parent=1 // pred_fallthru
      _
    // Predicated region
    $region6: #{tpu_custom_call.1} parent=1 // pred_check
      _
    $region7: #{tpu_custom_call.1} parent=1 // pred_check_branch
      %33 = sbr.rel (0) target = $region9
    $region8: #{tpu_custom_call.1} parent=1 // pred_region
      _
    $region9: #{tpu_custom_call.1} parent=1 // pred_fallthru
      _
    // Predicated region
    $region10: #{tpu_custom_call.1} parent=1 // pred_check
      _
    $region11: #{tpu_custom_call.1} parent=1 // pred_check_branch
      %35 = sbr.rel (0) target = $region13
    $region12: #{tpu_custom_call.1} parent=1 // pred_region
      %s37 = ssub.s32 256, 256
      %38 = vsyncadd [#allocation7], %s37
      %s39 = sshll.u32 [#allocation6], 4
      %s40 = int_to_ptr.vmem [resolvable:$true] %s39
      %45 = dma.hbm_to_vmem [thread:$0]  %s2, 256, %s40, [#allocation7], 64, 64, 4
    $region13: #{tpu_custom_call.1} parent=1 // pred_fallthru
      _
    // Predicated region
    $region14: #{tpu_custom_call.1} parent=1 // pred_check
      _
    $region15: #{tpu_custom_call.1} parent=1 // pred_check_branch
      %47 = sbr.rel (0) target = $region17
    $region16: #{tpu_custom_call.1} parent=1 // pred_region
      _
    $region17: #{tpu_custom_call.1} parent=1 // pred_fallthru
      _
    // Predicated region
    $region18: #{tpu_custom_call.1} parent=1 // pred_check
      _
    $region19: #{tpu_custom_call.1} parent=1 // pred_check_branch
      %49 = sbr.rel (0) target = $region21
    $region20: #{tpu_custom_call.1} parent=1 // pred_region
      _
    $region21: #{tpu_custom_call.1} parent=1 // pred_fallthru
      _
    // Predicated region
    $region22: #{tpu_custom_call.1} parent=1 // pred_check
      _
    $region23: #{tpu_custom_call.1} parent=1 // pred_check_branch
      %51 = sbr.rel (0) target = $region25
    $region24: #{tpu_custom_call.1} parent=1 // pred_region
      _
    $region25: #{tpu_custom_call.1} parent=1 // pred_fallthru
      _
    // Predicated region
    $region26: #{tpu_custom_call.1} parent=1 // pred_check
      _
    $region27: #{tpu_custom_call.1} parent=1 // pred_check_branch
      %53 = sbr.rel (0) target = $region29
    $region28: #{tpu_custom_call.1} parent=1 // pred_region
      _
    $region29: #{tpu_custom_call.1} parent=1 // pred_fallthru
      _
    // Predicated region
    $region30: #{tpu_custom_call.1} parent=1 // pred_check
      _
    $region31: #{tpu_custom_call.1} parent=1 // pred_check_branch
      %55 = sbr.rel (0) target = $region33
    $region32: #{tpu_custom_call.1} parent=1 // pred_region
      _
    $region33: #{tpu_custom_call.1} parent=1 // pred_fallthru
      _
    // Predicated region
    $region34: #{tpu_custom_call.1} parent=1 // pred_check
      _
    $region35: #{tpu_custom_call.1} parent=1 // pred_check_branch
      %57 = sbr.rel (0) target = $region37
    $region36: #{tpu_custom_call.1} parent=1 // pred_region
      %58 = dma.done [#allocation4], 128
    $region37: #{tpu_custom_call.1} parent=1 // pred_fallthru
      _
    // Predicated region
    $region38: #{tpu_custom_call.1} parent=1 // pred_check
      _
    $region39: #{tpu_custom_call.1} parent=1 // pred_check_branch
      %60 = sbr.rel (0) target = $region41
    $region40: #{tpu_custom_call.1} parent=1 // pred_region
      %61 = dma.done [#allocation7], 256
    $region41: #{tpu_custom_call.1} parent=1 // pred_fallthru
      _
    %v63 = vld [vmem:[#allocation3] sm:$0xf]
    %v64 = vld [vmem:[#allocation3 + $0x4] sm:$0xf]
    %v65 = vld [vmem:[%s1] sm:$0x1]
    %v66 = vld [vmem:[#allocation6] sm:$0xf]
    %v67 = vld [vmem:[#allocation6 + $0x4] sm:$0xf]
    %v68 = vld [vmem:[#allocation6 + $0x8] sm:$0xf]
    %v69 = vld [vmem:[#allocation6 + $0xc] sm:$0xf]
    %v70 = vld [vmem:[%s3] sm:$0x1]
    %v72 = vlaneseq
    %v73 = vshrl.u32 %v72, 7
    %v74 = vsub.s32 0, %v73
    %v75 = vrot.slane %v70, %v74
    %v79 = vunpack.c.l.b16 %v63
    %v80 = vunpack.c.l.b16 %v64
    %v81 = vpack.c.b16 %v80, %v79
    %v86 = vunpack.c.l.b16 %v66
    %v87 = vunpack.c.l.b16 %v67
    %v88 = vunpack.c.l.b16 %v68
    %v89 = vunpack.c.l.b16 %v69
    %v90 = vpack.c.b16 %v87, %v86
    %v91 = vpack.c.b16 %v89, %v88
    %vm94 = vcmask 261120
    %v96 = vsel %vm94, %v81, 0
    %98 = vmatprep.subr.bf16.mxu0 0
    %99 = vmatpush1.bf16.msra.mxu0 %v90
    %100 = vmatprep.subr.bf16.mxu0 0
    %101 = vmatpush1.bf16.msra.mxu0 %v91
    %102 = vmatprep.subr.bf16.mxu0 0
    %103 = vmatpush1.bf16.msra.mxu0 0
    %104 = vmatprep.subr.bf16.mxu0 0
    %105 = vmatpush1.bf16.msra.mxu0 0
    %106 = vmatprep.subr.bf16.mxu0 0
    %107 = vmatpush1.bf16.msra.mxu0 0
    %108 = vmatprep.subr.bf16.mxu0 0
    %109 = vmatpush1.bf16.msra.mxu0 0
    %110 = vmatprep.subr.bf16.mxu0 0
    %111 = vmatpush1.bf16.msra.mxu0 0
    %112 = vmatprep.subr.bf16.mxu0 0
    %113 = vmatpush1.bf16.msra.mxu0 0
    %114 = vmatprep.subr.bf16.mxu0 0
    %115 = vmatpush1.bf16.msra.mxu0 0
    %116 = vmatprep.subr.bf16.mxu0 0
    %117 = vmatpush1.bf16.msra.mxu0 0
    %118 = vmatprep.subr.bf16.mxu0 0
    %119 = vmatpush1.bf16.msra.mxu0 0
    %120 = vmatprep.subr.bf16.mxu0 0
    %121 = vmatpush1.bf16.msra.mxu0 0
    %122 = vmatprep.subr.bf16.mxu0 0
    %123 = vmatpush1.bf16.msra.mxu0 0
    %124 = vmatprep.subr.bf16.mxu0 0
    %125 = vmatpush1.bf16.msra.mxu0 0
    %126 = vmatprep.subr.bf16.mxu0 0
    %127 = vmatpush1.bf16.msra.mxu0 0
    %128 = vmatprep.subr.bf16.mxu0 0
    %129 = vmatpush1.bf16.msra.mxu0 0
    %130 = vmatprep.mubr.bf16.mxu0 0
    %131 = vmatmul.mubr.bf16.gmra.mrb[0].mxu0 %v96
    %v132 = vpop.f32.mrb[0].mxu0
    %v133 = vadd.f32 %v75, %v132
    %v134 = vpop.f32.mrb[0].mxu0
    %v135 = vpop.f32.mrb[0].mxu0
    %v136 = vadd.f32 %v75, %v135
    %v137 = vpop.f32.mrb[0].mxu0
    %138 = vdwg.mxu0
    %v139 = vld [vmem:[%s4] sm:$0xf]
    %v140 = vld [vmem:[%s4 + $0x4] sm:$0xf]
    %v141 = vld [vmem:[%s4 + $0x8] sm:$0xf]
    %v142 = vld [vmem:[%s4 + $0xc] sm:$0xf]
    %v143 = vld [vmem:[%s5] sm:$0x1]
    %v145 = vlaneseq
    %v146 = vshrl.u32 %v145, 7
    %v147 = vsub.s32 0, %v146
    %v148 = vrot.slane %v143, %v147
    %v154 = vunpack.c.l.b16 %v139
    %v155 = vunpack.c.l.b16 %v140
    %v156 = vunpack.c.l.b16 %v141
    %v157 = vunpack.c.l.b16 %v142
    %v158 = vpack.c.b16 %v155, %v154
    %v159 = vpack.c.b16 %v157, %v156
    %v163 = vsel %vm94, %v65, 0
    %165 = vmatprep.subr.bf16.mxu0 0
    %166 = vmatpush1.bf16.msra.mxu0 %v158
    %167 = vmatprep.subr.bf16.mxu0 0
    %168 = vmatpush1.bf16.msra.mxu0 %v159
    %169 = vmatprep.subr.bf16.mxu0 0
    %170 = vmatpush1.bf16.msra.mxu0 0
    %171 = vmatprep.subr.bf16.mxu0 0
    %172 = vmatpush1.bf16.msra.mxu0 0
    %173 = vmatprep.subr.bf16.mxu0 0
    %174 = vmatpush1.bf16.msra.mxu0 0
    %175 = vmatprep.subr.bf16.mxu0 0
    %176 = vmatpush1.bf16.msra.mxu0 0
    %177 = vmatprep.subr.bf16.mxu0 0
    %178 = vmatpush1.bf16.msra.mxu0 0
    %179 = vmatprep.subr.bf16.mxu0 0
    %180 = vmatpush1.bf16.msra.mxu0 0
    %181 = vmatprep.subr.bf16.mxu0 0
    %182 = vmatpush1.bf16.msra.mxu0 0
    %183 = vmatprep.subr.bf16.mxu0 0
    %184 = vmatpush1.bf16.msra.mxu0 0
    %185 = vmatprep.subr.bf16.mxu0 0
    %186 = vmatpush1.bf16.msra.mxu0 0
    %187 = vmatprep.subr.bf16.mxu0 0
    %188 = vmatpush1.bf16.msra.mxu0 0
    %189 = vmatprep.subr.bf16.mxu0 0
    %190 = vmatpush1.bf16.msra.mxu0 0
    %191 = vmatprep.subr.bf16.mxu0 0
    %192 = vmatpush1.bf16.msra.mxu0 0
    %193 = vmatprep.subr.bf16.mxu0 0
    %194 = vmatpush1.bf16.msra.mxu0 0
    %195 = vmatprep.subr.bf16.mxu0 0
    %196 = vmatpush1.bf16.msra.mxu0 0
    %197 = vmatprep.mubr.bf16.mxu0 0
    %198 = vmatmul.mubr.bf16.gmra.mrb[0].mxu0 %v163
    %v199 = vpop.f32.mrb[0].mxu0
    %v200 = vadd.f32 %v148, %v199
    %v201 = vpop.f32.mrb[0].mxu0
    %v202 = vpop.f32.mrb[0].mxu0
    %v203 = vpop.f32.mrb[0].mxu0
    %204 = vdwg.mxu0
    %v207 = vunpack.c.l.s4 1966171168
    %v208 = vunpack.c.0.s8 %v207
    %v209 = vlaneseq
    %v210 = vshrl.u32 %v209, 7
    %v211 = vsub.s32 %v208, %v210
    %v212 = vrot.slane %v200, %v211
    %v213 = vcombine.high %v212, %v212
    %v215 = vunpack.c.l.s4 1966171168
    %v216 = vunpack.c.0.s8 %v215
    %v217 = vlaneseq
    %v218 = vshrl.u32 %v217, 7
    %v219 = vsub.s32 %v216, %v218
    %v220 = vrot.slane %v212, %v219
    %v222 = vunpack.c.l.s4 1966171168
    %v223 = vunpack.c.0.s8 %v222
    %v224 = vlaneseq
    %v225 = vshrl.u32 %v224, 7
    %v226 = vsub.s32 %v223, %v225
    %v227 = vrot.slane %v213, %v226
    %v228 = vlaneseq
    %v229 = vshrl.u32 %v228, 7
    %v230 = vsub.s32 0, %v229
    %v231 = vrot.slane %v220, %v230
    %v232 = vlaneseq
    %v233 = vshrl.u32 %v232, 7
    %v234 = vsub.s32 0, %v233
    %v235 = vrot.slane %v227, %v234
    %v238 = vadd.f32 %v133, %v231
    %v239 = vadd.f32 %v136, %v235
    %v240 = vmax.f32 %v238, 0.0
    %v241 = vmax.f32 %v239, 0.0
    %v242 = vld [vmem:[%s6] sm:$0x1]
    %v244 = vlaneseq
    %v245 = vshrl.u32 %v244, 7
    %v246 = vsub.s32 0, %v245
    %v247 = vrot.slane %v242, %v246
    %v249 = vmul.f32 %v240, %v247
    %v250 = vmul.f32 %v241, %v247
    %251 = vadd.xlane.f32.xlu0 %v249
    %v252 = vpop.xlane.xlu0 %251
    %253 = vadd.xlane.f32.xlu0 %v250
    %v254 = vpop.xlane.xlu0 %253
    %s255 = sld [smem:[#allocation2]]
    %v256 = vstv %s255
    %v257 = vadd.f32 %v252, %v256
    %v258 = vadd.f32 %v254, %v256
    %v261 = vlaneseq
    %v262 = vand.u32 %v261, 127
    %v263 = vlaneseq
    %v264 = vshrl.u32 %v263, 7
    %v265 = vsub.s32 %v262, %v264
    %v266 = vrot.slane %v257, %v265
    %v267 = vlaneseq
    %v268 = vshrl.u32 %v267, 7
    %v269 = vsub.s32 %v262, %v268
    %v270 = vrot.slane %v258, %v269
    %vm271 = vcmask 1041409
    %v272 = vsel %vm271, %v270, %v266
    %vm274 = vcmask 58368
    %v275 = vsel %vm274, %v272, -inf
    %276 = vmax.xlane.f32.xlu0 %v275
    %v277 = vpop.xlane.xlu0 %276
    %v279 = vlaneseq
    %v280 = vshrl.u32 %v279, 7
    %v281 = vsub.s32 0, %v280
    %v282 = vrot.slane %v277, %v281
    %v283 = vlaneseq
    %v284 = vshrl.u32 %v283, 7
    %v285 = vsub.s32 1, %v284
    %v286 = vrot.slane %v277, %v285
    %v289 = vsub.f32 %v257, %v282
    %v290 = vsub.f32 %v258, %v286
    %v291 = vmul.f32 %v289, 1.442695
    %v292 = vpow.pop %v291
    %v293 = vmul.f32 %v290, 1.442695
    %v294 = vpow.pop %v293
    %297 = vset.pattern.permute.xlu0 0
    %298 = vperm.xlu0 %297, %v292
    %v299 = vpop.permute.xlu0 %298
    %300 = vset.pattern.permute.xlu0 0
    %301 = vperm.xlu0 %300, %v294
    %v302 = vpop.permute.xlu0 %301
    %v303 = vlaneseq
    %v304 = vshrl.u32 %v303, 7
    %v305 = vsub.s32 %v262, %v304
    %v306 = vrot.slane %v299, %v305
    %v307 = vlaneseq
    %v308 = vshrl.u32 %v307, 7
    %v309 = vsub.s32 %v262, %v308
    %v310 = vrot.slane %v302, %v309
    %v311 = vsel %vm271, %v310, %v306
    %v313 = vsel %vm274, %v311, 0.0
    %314 = vadd.xlane.f32.xlu0 %v313
    %v315 = vpop.xlane.xlu0 %314
    %v316 = vrcp.pop %v315
    %v318 = vlaneseq
    %v319 = vshrl.u32 %v318, 7
    %v320 = vsub.s32 0, %v319
    %v321 = vrot.slane %v316, %v320
    %v322 = vlaneseq
    %v323 = vshrl.u32 %v322, 7
    %v324 = vsub.s32 1, %v323
    %v325 = vrot.slane %v316, %v324
    %v328 = vmul.f32 %v292, %v321
    %v329 = vmul.f32 %v294, %v325
    %v330 = vunpack.c.l.bf16 %v63
    %v331 = vunpack.c.l.bf16 %v64
    %333 = vset.pattern.permute.xlu0 0
    %334 = vperm.xlu0 %333, %v328
    %v335 = vpop.permute.xlu0 %334
    %338 = vset.pattern.permute.xlu0 0
    %339 = vperm.xlu0 %338, %v329
    %v340 = vpop.permute.xlu0 %339
    %v342 = vmul.f32 %v330, %v335
    %v343 = vmul.f32 %v331, %v340
    %v344 = vsel %vm94, %v342, 0.0
    %v345 = vrot.slane %v344, 4
    %v346 = vadd.f32 %v344, %v345
    %v347 = vrot.slane %v346, 2
    %v348 = vadd.f32 %v346, %v347
    %v349 = vrot.slane %v348, 1
    %v350 = vadd.f32 %v348, %v349
    %v351 = vsel %vm94, %v343, 0.0
    %v352 = vrot.slane %v351, 4
    %v353 = vadd.f32 %v351, %v352
    %v354 = vrot.slane %v353, 2
    %v355 = vadd.f32 %v353, %v354
    %v356 = vrot.slane %v355, 1
    %v357 = vadd.f32 %v355, %v356
    %v360 = vsel %vm271, %v357, %v350
    %vm362 = vcmask 254976
    %363 = vst.msk [vmem:[#allocation8] sm:$0x3] %vm362, %v360
    %v364 = vlaneseq
    %v365 = vshrl.u32 %v364, 7
    %v366 = vsub.s32 %v262, %v365
    %v367 = vrot.slane %v335, %v366
    %v368 = vlaneseq
    %v369 = vshrl.u32 %v368, 7
    %v370 = vsub.s32 %v262, %v369
    %v371 = vrot.slane %v340, %v370
    %v372 = vsel %vm271, %v371, %v367
    %374 = vst.msk [vmem:[#allocation9] sm:$0x3] %vm274, %v372
    // Predicated region
    $region42: #{tpu_custom_call.1} parent=1 // pred_check
      _
    $region43: #{tpu_custom_call.1} parent=1 // pred_check_branch
      %376 = sbr.rel (0) target = $region45
    $region44: #{tpu_custom_call.1} parent=1 // pred_region
      %s378 = ssub.s32 32, 32
      %379 = vsyncadd [#allocation5], %s378
      %s381 = sshll.u32 [#allocation8], 4
      %s382 = int_to_ptr.vmem [resolvable:$true] %s381
      %384 = dma.vmem_to_hbm [thread:$0]  %s382, 32, %s8, [#allocation5]
    $region45: #{tpu_custom_call.1} parent=1 // pred_fallthru
      _
    // Predicated region
    $region46: #{tpu_custom_call.1} parent=1 // pred_check
      _
    $region47: #{tpu_custom_call.1} parent=1 // pred_check_branch
      %386 = sbr.rel (0) target = $region49
    $region48: #{tpu_custom_call.1} parent=1 // pred_region
      %s388 = ssub.s32 32, 32
      %389 = vsyncadd [#allocation10], %s388
      %s391 = sshll.u32 [#allocation9], 4
      %s392 = int_to_ptr.vmem [resolvable:$true] %s391
      %394 = dma.vmem_to_hbm [thread:$0]  %s392, 32, %s9, [#allocation10]
    $region49: #{tpu_custom_call.1} parent=1 // pred_fallthru
      _
    // Predicated region
    $region50: #{tpu_custom_call.1} parent=1 // pred_check
      _
    $region51: #{tpu_custom_call.1} parent=1 // pred_check_branch
      %396 = sbr.rel (0) target = $region53
    $region52: #{tpu_custom_call.1} parent=1 // pred_region
      %397 = dma.done [#allocation5], 32
    $region53: #{tpu_custom_call.1} parent=1 // pred_fallthru
      _
    // Predicated region
    $region54: #{tpu_custom_call.1} parent=1 // pred_check
      _
    $region55: #{tpu_custom_call.1} parent=1 // pred_check_branch
      %399 = sbr.rel (0) target = $region57
    $region56: #{tpu_custom_call.1} parent=1 // pred_region
      %400 = dma.done [#allocation10], 32
    $region57: #{tpu_custom_call.1} parent=1 // pred_fallthru
      _
    %401 = vsyncpa [#allocation4], 1
    %402 = vsyncpa [#allocation7], 1
    %403 = vsyncpa [#allocation5], 1
    %404 = vsyncpa [#allocation10], 1

</llo_original>
